<compile_context>
chip_gen: v6e
topology: v6e:2x2x1
jax: 0.10.0
libtpu: 0.0.40
codegen_flags: <defaults>
</compile_context>

<pallas_src>
import functools

import numpy as np
import jax
import jax.numpy as jnp
from jax import lax
from jax.experimental import pallas as pl
from jax.experimental.pallas import tpu as pltpu

# Deterministic in-script "config" values (mirror typical MrT5 settings).
SIGMOID_MASK_SCALE = -30.0
FIXED_DELETION_AMOUNT = 0.5

# Fixed separator-token set from the module's __init__ (not a learned param).
SEP_TOKENS = (12, 13, 35, 36, 37, 38, 39, 40, 41, 42, 43, 44, 45, 46, 47, 48,
              49, 50, 61, 62, 63, 64, 65, 66, 67, 94, 95, 96, 97, 98, 99, 126,
              127, 128, 129, 1)

_LANE = 128
_NUM_PROGRAMS = 2      # bin-chunk split across (up to) two TensorCores (v7x)
_BIG = 1e9             # sentinel tag for padded positions in sep_pos


def _round_up(x, m):
    return (x + m - 1) // m * m


def _is_sep(ids):
    # Membership in SEP_TOKENS via 6 range checks (exactly covers the 36 ids:
    # {1}, [12,13], [35,50], [61,67], [94,99], [126,129]).
    return ((ids == 1)
            | ((ids >= 12) & (ids <= 13))
            | ((ids >= 35) & (ids <= 50))
            | ((ids >= 61) & (ids <= 67))
            | ((ids >= 94) & (ids <= 99))
            | ((ids >= 126) & (ids <= 129)))


def _delete_gate_kernel(ids_ref, offmat_ref, out_ref, sep_ref, *,
                        num_bin_chunks, deletion_amount):
    # ids_ref:    (R, 128) int32, R = B*C rows of 128-column blocks, pad id = -1
    # offmat_ref: (R, R) bf16, kron(I_B, strict-lower-tri_C) block-offset mask
    # out_ref:    (8, S_pad) f32 per-program "zeroed count" rows (all 8 equal)
    # sep_ref:    (R, 128) f32 VMEM scratch for sep_pos (padded positions = _BIG)
    R, _ = ids_ref.shape
    S_pad = out_ref.shape[-1]
    p = pl.program_id(0)

    # ---- hoisted constants -------------------------------------------------
    r128 = lax.broadcasted_iota(jnp.int32, (_LANE, _LANE), 0)
    c128 = lax.broadcasted_iota(jnp.int32, (_LANE, _LANE), 1)
    tri_incl = (r128 <= c128).astype(jnp.bfloat16)            # inclusive cumsum
    sub_iota = lax.broadcasted_iota(jnp.int32, (_LANE, 1), 0)  # (128, 1)
    col_pos = lax.broadcasted_iota(jnp.int32, (1, S_pad), 1)   # (1, S_pad)
    ones8 = jnp.ones((8, _LANE), jnp.bfloat16)                 # MXU sublane reduce

    # ---- Phase A: two-level inclusive cumsum of is_sep -> sep_pos ----------
    ids = ids_ref[...]
    valid = ids >= 0                                  # pad id is -1 (never a sep)
    sep_bf = _is_sep(ids).astype(jnp.bfloat16)        # cast right before the dot
    local = jnp.dot(sep_bf, tri_incl,
                    preferred_element_type=jnp.float32)        # (R,128) in-block
    tot = local[:, _LANE - 1:_LANE]                            # (R,1) block sums
    offs = jnp.dot(offmat_ref[...], tot.astype(jnp.bfloat16),
                   preferred_element_type=jnp.float32)         # (R,1) offsets
    sep_pos = local + offs                                     # exact ints (f32)
    v_max = jnp.max(sep_pos)                                   # max sep count
    sep_ref[...] = jnp.where(valid, sep_pos, _BIG)

    # ---- Phase B: independent 128-bin chunks -> zeroed-column row ----------
    out_ref[...] = jnp.zeros_like(out_ref)
    n_iter = (num_bin_chunks + _NUM_PROGRAMS - 1) // _NUM_PROGRAMS

    @pl.loop(0, n_iter)
    def _(i):
        g = i * _NUM_PROGRAMS + p                 # this program's bin chunk
        lo = g * _LANE
        lo_f = lo.astype(jnp.float32)

        # Chunks entirely above the largest sep_pos have counts == 0 -> skip.
        @pl.when(lo_f <= v_max)
        def _():
            bins_col = (sub_iota + lo).astype(jnp.float32)     # (128, 1)

            # ends[v] = #{(b,s) valid : sep_pos <= v}; register-accumulated
            # compares, one lane reduce per chunk (no one-hot, no N=1 matmul).
            def row_body(r, acc):
                row = sep_ref[pl.ds(r, 1), :]                  # (1, 128)
                return acc + (row <= bins_col).astype(jnp.float32)

            part = lax.fori_loop(0, R, row_body,
                                 jnp.zeros((_LANE, _LANE), jnp.float32),
                                 unroll=R <= 16)
            ends = jnp.sum(part, axis=1, keepdims=True)        # (128, 1)

            # starts[v] = #{sep_pos < v}: roll of ends + chunk boundary scalar.
            below = jnp.sum((sep_ref[...] < lo_f).astype(jnp.float32))
            starts = pltpu.roll(ends, shift=1, axis=0)
            starts = jnp.where(sub_iota == 0, below, starts)
            counts = ends - starts
            nz = jnp.ceil((1.0 - deletion_amount) * counts)    # (128, 1)

            # Column j deleted iff 0 <= j - starts[v] < nz[v] for some bin v.
            d = col_pos - starts.astype(jnp.int32)             # (128, S_pad)
            in_zero = (pltpu.bitcast(d, jnp.uint32)
                       < pltpu.bitcast(nz.astype(jnp.int32), jnp.uint32))
            # Sublane reduction on the (nearly idle) MXU; (8,S_pad) costs the
            # same vregs as (1,S_pad) and keeps the accumulate unmasked.
            out_ref[...] += jnp.dot(ones8, in_zero.astype(jnp.bfloat16),
                                    preferred_element_type=jnp.float32)


def fixed_delete_gate(hidden_states, input_ids, *,
                      sigmoid_mask_scale=SIGMOID_MASK_SCALE,
                      fixed_deletion_amount=FIXED_DELETION_AMOUNT):
    """Pallas equivalent of FixedDeleteGate.forward.

    hidden_states is accepted for API parity but -- exactly like the PyTorch
    module -- is never read; the gate depends only on input_ids.
    Returns (delete_gate_mask, delete_gate_mask), each (B, S, 1) float32.
    """
    del hidden_states  # unused, by construction of the reference module
    B, S = input_ids.shape
    if B * S >= (1 << 24):
        # counts/starts are exact integers held in f32 (review concern #1).
        raise ValueError("fixed_delete_gate: B*S must be < 2**24 for exactness")

    S_pad = _round_up(S, _LANE)
    C = S_pad // _LANE
    R = B * C
    num_bins = _round_up(S + 1, _LANE)          # bins 0..S, padded to 128
    G = num_bins // _LANE

    ids = input_ids.astype(jnp.int32)
    if S_pad != S:
        ids = jnp.pad(ids, ((0, 0), (0, S_pad - S)), constant_values=-1)
    ids2d = ids.reshape(R, _LANE)               # (B*C, 128) retile for Phase A

    # Constant block-offset scan matrix: kron(I_B, strict-lower-tri_C).
    # TODO(synk): hierarchical scan instead of the (R,R) mask when B*C is huge.
    offmat = jnp.asarray(
        np.kron(np.eye(B, dtype=np.float32),
                np.tril(np.ones((C, C), dtype=np.float32), -1)),
        dtype=jnp.bfloat16)

    # Explicit VMEM budget (v7x has only 64 MiB physical VMEM).
    est_vmem = (2 * R * _LANE * 4              # ids2d
                + 2 * R * R * 2                # offmat (bf16)
                + R * _LANE * 4                # sep_pos scratch
                + _NUM_PROGRAMS * 8 * S_pad * 4  # output blocks
                + 6 * _LANE * S_pad * 4        # (128, S_pad) Phase-B temporaries
                + (1 << 20))                   # constants / slack
    vmem_limit = int(min(max(32 * 1024 * 1024, 2 * est_vmem), 64 * 1024 * 1024))

    kernel = functools.partial(_delete_gate_kernel,
                               num_bin_chunks=G,
                               deletion_amount=float(fixed_deletion_amount))
    zrows = pl.pallas_call(
        kernel,
        out_shape=jax.ShapeDtypeStruct((_NUM_PROGRAMS * 8, S_pad), jnp.float32),
        grid_spec=pltpu.PrefetchScalarGridSpec(
            num_scalar_prefetch=0,
            grid=(_NUM_PROGRAMS,),
            in_specs=[pl.BlockSpec((R, _LANE), lambda p: (0, 0)),
                      pl.BlockSpec((R, R), lambda p: (0, 0))],
            out_specs=pl.BlockSpec((8, S_pad), lambda p: (p, 0)),
            scratch_shapes=[pltpu.VMEM((R, _LANE), jnp.float32)]),   # sep_pos
        compiler_params=pltpu.CompilerParams(
            dimension_semantics=("parallel",),
            vmem_limit_bytes=vmem_limit),
    )(ids2d, offmat)

    # Combine the per-program partial "zeroed" rows (disjoint bin chunks).
    zcount = zrows[::8, :S].sum(axis=0)                      # (S,)
    mask_row = jnp.where(zcount > 0.0, jnp.float32(0.0),
                         jnp.float32(sigmoid_mask_scale))
    # Kept (B, S, 1) for module parity (review item 11 noted).
    mask = jnp.broadcast_to(mask_row[None, :, None], (B, S, 1)).astype(jnp.float32)
    return mask, mask


def _reference_mask(input_ids, scale, deletion_amount, sep_tokens):
    """NumPy port of FixedDeleteGate.__create_mask (for validation)."""
    ids = np.asarray(input_ids)
    B, S = ids.shape
    mask = np.full((B, S), scale, dtype=np.float32)
    is_sep = np.isin(ids, np.asarray(sep_tokens))
    sep_pos = np.cumsum(is_sep.astype(np.int64), axis=1)
    counts = np.bincount(sep_pos.reshape(-1), minlength=S)
    starts = np.cumsum(np.concatenate([[0], counts[:-1]]))
    ends = np.cumsum(counts)
    num_zeros = np.ceil((1.0 - deletion_amount) * (ends - starts)).astype(np.int64)
    for i in range(B):
        for start, cnt in zip(starts, num_zeros):
            mask[i, start:start + cnt] = 0.0
    return mask


if __name__ == "__main__":
    key = jax.random.PRNGKey(0)
    k_ids, k_hid, k_ids2 = jax.random.split(key, 3)

    # Primary small config (consistent with the module's forward signature).
    B, S, H = 2, 16, 32
    input_ids = jax.random.randint(k_ids, (B, S), 0, 160, dtype=jnp.int32)
    hidden_states = jax.random.normal(k_hid, (B, S, H), dtype=jnp.float32)

    gate_mask, gate_mask_again = fixed_delete_gate(hidden_states, input_ids)
    jax.block_until_ready(gate_mask)

    ref = _reference_mask(input_ids, SIGMOID_MASK_SCALE,
                          FIXED_DELETION_AMOUNT, SEP_TOKENS)
    np.testing.assert_allclose(np.asarray(gate_mask)[..., 0], ref, rtol=0, atol=0)
    np.testing.assert_allclose(np.asarray(gate_mask_again)[..., 0], ref, rtol=0, atol=0)
    assert gate_mask.shape == (B, S, 1) and gate_mask.dtype == jnp.float32

    # Multi-block / multi-chunk / padded-tail config (S > 128, S % 128 != 0).
    B2, S2 = 3, 200
    ids2 = jax.random.randint(k_ids2, (B2, S2), 0, 160, dtype=jnp.int32)
    hid2 = jnp.zeros((B2, S2, 8), dtype=jnp.float32)
    gm2, _ = fixed_delete_gate(hid2, ids2)
    jax.block_until_ready(gm2)
    ref2 = _reference_mask(ids2, SIGMOID_MASK_SCALE,
                           FIXED_DELETION_AMOUNT, SEP_TOKENS)
    np.testing.assert_allclose(np.asarray(gm2)[..., 0], ref2, rtol=0, atol=0)

    # Sep-dense config: max(sep_pos) > 128 so the odd bin chunk (program 1)
    # materially changes the mask -> exercises the roll / `below` boundary
    # and the cross-program combine.
    B3, S3 = 2, 300
    pos = jnp.arange(S3, dtype=jnp.int32)
    row3 = jnp.where(pos < 200, 35, 70).astype(jnp.int32)   # first 200 are seps
    ids3 = jnp.broadcast_to(row3[None, :], (B3, S3))
    gm3, _ = fixed_delete_gate(jnp.zeros((B3, S3, 4), jnp.float32), ids3)
    jax.block_until_ready(gm3)
    ref3 = _reference_mask(ids3, SIGMOID_MASK_SCALE,
                           FIXED_DELETION_AMOUNT, SEP_TOKENS)
    np.testing.assert_allclose(np.asarray(gm3)[..., 0], ref3, rtol=0, atol=0)

    print("KERNEL_OK")
</pallas_src>

<mosaic_0001>
module attributes {stable_mosaic.version = 11 : i64} {
  func.func @_delete_gate_kernel(%arg0: i32, %arg1: memref<2x128xi32, #tpu.memory_space<vmem>>, %arg2: memref<2x2xbf16, #tpu.memory_space<vmem>>, %arg3: memref<8x128xf32, #tpu.memory_space<vmem>>, %arg4: memref<2x128xf32, #tpu.memory_space<vmem>>) attributes {dimension_semantics = [#tpu.dimension_semantics<parallel>], iteration_bounds = array<i64: 2>, scalar_prefetch = 0 : i64, scratch_operands = 1 : i64, tpu.core_type = #tpu.core_type<tc>, window_params = [{pipeline_mode = #tpu.pipeline_mode<synchronous>, transform_indices = @transform_0, window_bounds = array<i64: 2, 128>}, {pipeline_mode = #tpu.pipeline_mode<synchronous>, transform_indices = @transform_1, window_bounds = array<i64: 2, 2>}, {transform_indices = @transform_2, window_bounds = array<i64: 8, 128>}]} {
    %0 = tpu.iota {dimensions = array<i32: 0>} : vector<128x128xi32>
    %1 = tpu.iota {dimensions = array<i32: 1>} : vector<128x128xi32>
    %2 = arith.cmpi sle, %0, %1 : vector<128x128xi32>
    %3 = arith.extui %2 : vector<128x128xi1> to vector<128x128xi32>
    %4 = arith.sitofp %3 : vector<128x128xi32> to vector<128x128xf32>
    %5 = arith.truncf %4 : vector<128x128xf32> to vector<128x128xbf16>
    %6 = tpu.iota {dimensions = array<i32: 0>} : vector<128x1xi32>
    %7 = tpu.iota {dimensions = array<i32: 1>} : vector<1x128xi32>
    %cst = arith.constant 1.000000e+00 : bf16
    %8 = vector.broadcast %cst : bf16 to vector<8x128xbf16>
    %c0 = arith.constant 0 : index
    %c0_0 = arith.constant 0 : index
    %9 = vector.load %arg1[%c0, %c0_0] : memref<2x128xi32, #tpu.memory_space<vmem>>, vector<2x128xi32>
    %c0_i32 = arith.constant 0 : i32
    %10 = vector.broadcast %c0_i32 : i32 to vector<2x128xi32>
    %11 = arith.cmpi sge, %9, %10 : vector<2x128xi32>
    %c1_i32 = arith.constant 1 : i32
    %12 = vector.broadcast %c1_i32 : i32 to vector<2x128xi32>
    %13 = arith.cmpi eq, %9, %12 : vector<2x128xi32>
    %c12_i32 = arith.constant 12 : i32
    %14 = vector.broadcast %c12_i32 : i32 to vector<2x128xi32>
    %15 = arith.cmpi sge, %9, %14 : vector<2x128xi32>
    %c13_i32 = arith.constant 13 : i32
    %16 = vector.broadcast %c13_i32 : i32 to vector<2x128xi32>
    %17 = arith.cmpi sle, %9, %16 : vector<2x128xi32>
    %18 = arith.andi %15, %17 : vector<2x128xi1>
    %19 = arith.ori %13, %18 : vector<2x128xi1>
    %c35_i32 = arith.constant 35 : i32
    %20 = vector.broadcast %c35_i32 : i32 to vector<2x128xi32>
    %21 = arith.cmpi sge, %9, %20 : vector<2x128xi32>
    %c50_i32 = arith.constant 50 : i32
    %22 = vector.broadcast %c50_i32 : i32 to vector<2x128xi32>
    %23 = arith.cmpi sle, %9, %22 : vector<2x128xi32>
    %24 = arith.andi %21, %23 : vector<2x128xi1>
    %25 = arith.ori %19, %24 : vector<2x128xi1>
    %c61_i32 = arith.constant 61 : i32
    %26 = vector.broadcast %c61_i32 : i32 to vector<2x128xi32>
    %27 = arith.cmpi sge, %9, %26 : vector<2x128xi32>
    %c67_i32 = arith.constant 67 : i32
    %28 = vector.broadcast %c67_i32 : i32 to vector<2x128xi32>
    %29 = arith.cmpi sle, %9, %28 : vector<2x128xi32>
    %30 = arith.andi %27, %29 : vector<2x128xi1>
    %31 = arith.ori %25, %30 : vector<2x128xi1>
    %c94_i32 = arith.constant 94 : i32
    %32 = vector.broadcast %c94_i32 : i32 to vector<2x128xi32>
    %33 = arith.cmpi sge, %9, %32 : vector<2x128xi32>
    %c99_i32 = arith.constant 99 : i32
    %34 = vector.broadcast %c99_i32 : i32 to vector<2x128xi32>
    %35 = arith.cmpi sle, %9, %34 : vector<2x128xi32>
    %36 = arith.andi %33, %35 : vector<2x128xi1>
    %37 = arith.ori %31, %36 : vector<2x128xi1>
    %c126_i32 = arith.constant 126 : i32
    %38 = vector.broadcast %c126_i32 : i32 to vector<2x128xi32>
    %39 = arith.cmpi sge, %9, %38 : vector<2x128xi32>
    %c129_i32 = arith.constant 129 : i32
    %40 = vector.broadcast %c129_i32 : i32 to vector<2x128xi32>
    %41 = arith.cmpi sle, %9, %40 : vector<2x128xi32>
    %42 = arith.andi %39, %41 : vector<2x128xi1>
    %43 = arith.ori %37, %42 : vector<2x128xi1>
    %44 = arith.extui %43 : vector<2x128xi1> to vector<2x128xi32>
    %45 = arith.sitofp %44 : vector<2x128xi32> to vector<2x128xf32>
    %46 = arith.truncf %45 : vector<2x128xf32> to vector<2x128xbf16>
    %cst_1 = arith.constant dense<0.000000e+00> : vector<2x128xf32>
    %47 = tpu.matmul %46, %5, %cst_1 {dimension_numbers = #tpu.dot_dimension_numbers<[1], [0], [0], [1], [0, 0, 1, 1], [], []>} : vector<2x128xbf16>, vector<128x128xbf16>, vector<2x128xf32> -> vector<2x128xf32>
    %48 = vector.extract_strided_slice %47 {offsets = [0, 127], sizes = [2, 1], strides = [1, 1]} : vector<2x128xf32> to vector<2x1xf32>
    %c0_2 = arith.constant 0 : index
    %c0_3 = arith.constant 0 : index
    %49 = vector.load %arg2[%c0_2, %c0_3] : memref<2x2xbf16, #tpu.memory_space<vmem>>, vector<2x2xbf16>
    %50 = arith.truncf %48 : vector<2x1xf32> to vector<2x1xbf16>
    %cst_4 = arith.constant dense<0.000000e+00> : vector<2x1xf32>
    %51 = tpu.matmul %49, %50, %cst_4 {dimension_numbers = #tpu.dot_dimension_numbers<[1], [0], [0], [1], [0, 0, 1, 1], [], []>} : vector<2x2xbf16>, vector<2x1xbf16>, vector<2x1xf32> -> vector<2x1xf32>
    %52 = vector.broadcast %51 : vector<2x1xf32> to vector<2x128xf32>
    %53 = arith.addf %47, %52 : vector<2x128xf32>
    %54 = vector.shape_cast %53 : vector<2x128xf32> to vector<1x2x128xf32>
    %cst_5 = arith.constant dense<0xFF800000> : vector<1xf32>
    %55 = vector.multi_reduction <maximumf>, %54, %cst_5 [1, 2] : vector<1x2x128xf32> to vector<1xf32>
    %56 = vector.shape_cast %55 : vector<1xf32> to vector<1x1x1xf32>
    %57 = vector.extract %56[0, 0, 0] : f32 from vector<1x1x1xf32>
    %cst_6 = arith.constant 1.000000e+09 : f32
    %58 = vector.broadcast %cst_6 : f32 to vector<2x128xf32>
    %59 = arith.select %11, %53, %58 : vector<2x128xi1>, vector<2x128xf32>
    %c0_7 = arith.constant 0 : index
    %c0_8 = arith.constant 0 : index
    %60 = vector.load %arg4[%c0_7, %c0_8] : memref<2x128xf32, #tpu.memory_space<vmem>>, vector<2x128xf32>
    tpu.vector_store %arg4[%c0_7, %c0_8], %59 {strides = array<i32>} : memref<2x128xf32, #tpu.memory_space<vmem>>, vector<2x128xf32>,
    %cst_9 = arith.constant 0.000000e+00 : f32
    %61 = vector.broadcast %cst_9 : f32 to vector<8x128xf32>
    %c0_10 = arith.constant 0 : index
    %c0_11 = arith.constant 0 : index
    %62 = vector.load %arg3[%c0_10, %c0_11] : memref<8x128xf32, #tpu.memory_space<vmem>>, vector<8x128xf32>
    tpu.vector_store %arg3[%c0_10, %c0_11], %61 {strides = array<i32>} : memref<8x128xf32, #tpu.memory_space<vmem>>, vector<8x128xf32>,
    %c0_i32_12 = arith.constant 0 : i32
    %c1_i32_13 = arith.constant 1 : i32
    %63 = arith.muli %c0_i32_12, %c1_i32_13 : i32
    %c0_i32_14 = arith.constant 0 : i32
    %64 = arith.addi %c0_i32_14, %63 : i32
    %c2_i32 = arith.constant 2 : i32
    %65 = arith.muli %64, %c2_i32 : i32
    %66 = arith.addi %65, %arg0 : i32
    %c128_i32 = arith.constant 128 : i32
    %67 = arith.muli %66, %c128_i32 : i32
    %68 = arith.sitofp %67 : i32 to f32
    %69 = arith.cmpf ole, %68, %57 : f32
    %70 = arith.extui %69 : i1 to i32
    %c0_i32_15 = arith.constant 0 : i32
    %71 = arith.cmpi ne, %70, %c0_i32_15 : i32
    scf.if %71 {
      %72 = vector.broadcast %67 : i32 to vector<128x1xi32>
      %73 = arith.addi %6, %72 : vector<128x1xi32>
      %74 = arith.sitofp %73 : vector<128x1xi32> to vector<128x1xf32>
      %cst_17 = arith.constant 0.000000e+00 : f32
      %75 = vector.broadcast %cst_17 : f32 to vector<128x128xf32>
      %c0_i32_18 = arith.constant 0 : i32
      %76 = arith.index_cast %c0_i32_18 : i32 to index
      %c0_19 = arith.constant 0 : index
      %77 = vector.load %arg4[%76, %c0_19] : memref<2x128xf32, #tpu.memory_space<vmem>>, vector<1x128xf32>
      %78 = vector.broadcast %77 : vector<1x128xf32> to vector<128x128xf32>
      %79 = vector.broadcast %74 : vector<128x1xf32> to vector<128x128xf32>
      %80 = arith.cmpf ole, %78, %79 : vector<128x128xf32>
      %81 = arith.extui %80 : vector<128x128xi1> to vector<128x128xi32>
      %82 = arith.sitofp %81 : vector<128x128xi32> to vector<128x128xf32>
      %83 = arith.addf %75, %82 : vector<128x128xf32>
      %c1_i32_20 = arith.constant 1 : i32
      %84 = arith.index_cast %c1_i32_20 : i32 to index
      %c0_21 = arith.constant 0 : index
      %85 = vector.load %arg4[%84, %c0_21] : memref<2x128xf32, #tpu.memory_space<vmem>>, vector<1x128xf32>
      %86 = vector.broadcast %85 : vector<1x128xf32> to vector<128x128xf32>
      %87 = vector.broadcast %74 : vector<128x1xf32> to vector<128x128xf32>
      %88 = arith.cmpf ole, %86, %87 : vector<128x128xf32>
      %89 = arith.extui %88 : vector<128x128xi1> to vector<128x128xi32>
      %90 = arith.sitofp %89 : vector<128x128xi32> to vector<128x128xf32>
      %91 = arith.addf %83, %90 : vector<128x128xf32>
      %c2_i32_22 = arith.constant 2 : i32
      %cst_23 = arith.constant dense<0.000000e+00> : vector<128xf32>
      %92 = vector.multi_reduction <add>, %91, %cst_23 [1] : vector<128x128xf32> to vector<128xf32>
      %93 = vector.shape_cast %92 : vector<128xf32> to vector<128x1xf32>
      %c0_24 = arith.constant 0 : index
      %c0_25 = arith.constant 0 : index
      %94 = vector.load %arg4[%c0_24, %c0_25] : memref<2x128xf32, #tpu.memory_space<vmem>>, vector<2x128xf32>
      %95 = vector.broadcast %68 : f32 to vector<2x128xf32>
      %96 = arith.cmpf olt, %94, %95 : vector<2x128xf32>
      %97 = arith.extui %96 : vector<2x128xi1> to vector<2x128xi32>
      %98 = arith.sitofp %97 : vector<2x128xi32> to vector<2x128xf32>
      %99 = vector.shape_cast %98 : vector<2x128xf32> to vector<1x2x128xf32>
      %cst_26 = arith.constant dense<0.000000e+00> : vector<1xf32>
      %100 = vector.multi_reduction <add>, %99, %cst_26 [1, 2] : vector<1x2x128xf32> to vector<1xf32>
      %101 = vector.shape_cast %100 : vector<1xf32> to vector<1x1x1xf32>
      %102 = vector.extract %101[0, 0, 0] : f32 from vector<1x1x1xf32>
      %c1_i32_27 = arith.constant 1 : i32
      %103 = tpu.dynamic_rotate %93 by %c1_i32_27 dim 0 : vector<128x1xf32>, i32 -> vector<128x1xf32>
      %c0_i32_28 = arith.constant 0 : i32
      %104 = vector.broadcast %c0_i32_28 : i32 to vector<128x1xi32>
      %105 = arith.cmpi eq, %6, %104 : vector<128x1xi32>
      %106 = vector.broadcast %102 : f32 to vector<128x1xf32>
      %107 = arith.select %105, %106, %103 : vector<128x1xi1>, vector<128x1xf32>
      %108 = arith.subf %93, %107 : vector<128x1xf32>
      %cst_29 = arith.constant 5.000000e-01 : f32
      %109 = vector.broadcast %cst_29 : f32 to vector<128x1xf32>
      %110 = arith.mulf %109, %108 : vector<128x1xf32>
      %111 = math.ceil %110 : vector<128x1xf32>
      %112 = arith.fptosi %107 : vector<128x1xf32> to vector<128x1xi32>
      %113 = vector.broadcast %7 : vector<1x128xi32> to vector<128x128xi32>
      %114 = vector.broadcast %112 : vector<128x1xi32> to vector<128x128xi32>
      %115 = arith.subi %113, %114 : vector<128x128xi32>
      %116 = tpu.bitcast %115 : vector<128x128xi32> -> vector<128x128xi32>
      %117 = arith.fptosi %111 : vector<128x1xf32> to vector<128x1xi32>
      %118 = tpu.bitcast %117 : vector<128x1xi32> -> vector<128x1xi32>
      %119 = vector.broadcast %118 : vector<128x1xi32> to vector<128x128xi32>
      %120 = arith.cmpi ult, %116, %119 : vector<128x128xi32>
      %c0_30 = arith.constant 0 : index
      %c0_31 = arith.constant 0 : index
      %121 = vector.load %arg3[%c0_30, %c0_31] : memref<8x128xf32, #tpu.memory_space<vmem>>, vector<8x128xf32>
      %122 = arith.extui %120 : vector<128x128xi1> to vector<128x128xi32>
      %123 = arith.sitofp %122 : vector<128x128xi32> to vector<128x128xf32>
      %124 = arith.truncf %123 : vector<128x128xf32> to vector<128x128xbf16>
      %cst_32 = arith.constant dense<0.000000e+00> : vector<8x128xf32>
      %125 = tpu.matmul %8, %124, %cst_32 {dimension_numbers = #tpu.dot_dimension_numbers<[1], [0], [0], [1], [0, 0, 1, 1], [], []>} : vector<8x128xbf16>, vector<128x128xbf16>, vector<8x128xf32> -> vector<8x128xf32>
      %126 = arith.addf %121, %125 : vector<8x128xf32>
      %c0_33 = arith.constant 0 : index
      %c0_34 = arith.constant 0 : index
      %127 = vector.load %arg3[%c0_33, %c0_34] : memref<8x128xf32, #tpu.memory_space<vmem>>, vector<8x128xf32>
      tpu.vector_store %arg3[%c0_33, %c0_34], %126 {strides = array<i32>} : memref<8x128xf32, #tpu.memory_space<vmem>>, vector<8x128xf32>,
    } else {
    }
    %c1_i32_16 = arith.constant 1 : i32
    return
  }
  func.func @transform_0(%arg0: i32) -> (i32, i32) {
    %c0_i32 = arith.constant 0 : i32
    %c0_i32_0 = arith.constant 0 : i32
    %c0_i32_1 = arith.constant 0 : i32
    return %c0_i32, %c0_i32_0 : i32, i32
  }
  func.func @transform_1(%arg0: i32) -> (i32, i32) {
    %c0_i32 = arith.constant 0 : i32
    %c0_i32_0 = arith.constant 0 : i32
    %c0_i32_1 = arith.constant 0 : i32
    return %c0_i32, %c0_i32_0 : i32, i32
  }
  func.func @transform_2(%arg0: i32) -> (i32, i32) {
    %c0_i32 = arith.constant 0 : i32
    %c0_i32_0 = arith.constant 0 : i32
    return %arg0, %c0_i32 : i32, i32
  }
}

</mosaic_0001>

<llo_original>
// kernel: tpu_custom_call.1
$region0: #{tpu_custom_call.1}
  #allocation0 [shape = 'u32[]', space=smem, size = 0x4, offset = 0x4, fixed_abs, tag = 'smem constant byte address 0x4 - core index']
  #allocation1 [shape = 'u32[144,128]{1,0:T(1,128)}', space=vmem, size = 0x12000, scoped, tag = 'internal scratch']
  #allocation2 [shape = 'f32[2,128]{1,0:T(2,128)}', space=vmem, size = 0x400, scoped, tag = 'scratch operand']
  %s0 = inlined_call_operand.hbm [shape: s32[2,128], index: 0, kind: input, shape index: {}]
  %s1 = inlined_call_operand.vmem [shape: bf16[2,2], index: 1, kind: input, shape index: {}]
  %s2 = inlined_call_operand.hbm [shape: f32[16,128], index: 2, kind: output, shape index: {}]
  %s3 = sld [smem:[#allocation0]]
  $region49: #{tpu_custom_call.1} parent=0
    _
  %s5 = ssub.s32 1, %s3
  %s6 = scalar_select 0, %s5, %s3
  $region1: #{tpu_custom_call.1} parent=0
    #allocation3 [shape = 'u8[1024]{0}', space=vmem, size = 0x400, scoped, tag = 'input window, operand 0, single buffered']
    #allocation4 [shape = 's32[2]{0}', space=sflag, size = 0x8, scoped, tag = 'scoped memory for tpu_custom_call.1']
    #allocation5 [shape = 's32[2]{0}', space=sflag, size = 0x8, scoped, tag = 'scoped memory for tpu_custom_call.1']
    #allocation6 [shape = 'u8[8192]{0}', space=vmem, size = 0x2000, scoped, tag = 'output window, operand 0']
    %7 = vsyncpa [#allocation4], 0
    %8 = vsyncpa [#allocation5], 0
    %s9 = scalar_lea.sflag [#allocation5], 1
    %10 = vsyncpa %s9, 0
    loop: start=0, step=1, limit=4
    $region2: #{tpu_custom_call.1} parent=1 // loop_pre_header
      _
    $region3: #{tpu_custom_call.1} parent=1 // loop_header
      %s12 = sphi 0, %s16
      %p13 = scmp.ge.s32.totalorder %s12, 4
      %s20 = sphi 0, %s20
      %s22 = sphi 0, %s20
      %s23 = sphi 0, %s22
      %s37 = sphi 0, %s23
      %s41 = sphi 0, %s41
      %s43 = sphi 0, %s41
      %s44 = sphi 0, %s43
      %s58 = sphi 0, %s44
      %s64 = sphi 0, %s66
      %s67 = sphi 0, %s64
      %s68 = sphi 0, %s67
      %s84 = sphi 0, %s68
    $region4: #{tpu_custom_call.1} parent=1 // loop_header_branch
      %15 = sbr.rel (%p13) target = $region8
    $region5: #{tpu_custom_call.1} parent=1 // loop_body
      %s17 = ssub.s32 %s12, 1
      %s18 = ssub.s32 %s12, 2
      %s19 = sadd.s32 %s12, 1
      %s21 = sadd.s32 %s20, 1
      %p24 = scmp.eq.s32.totalorder %s12, 1
      %p25 = scmp.ne.s32.totalorder %s20, %s22
      %p26 = scmp.eq.s32.totalorder %s12, 0
      %p27 = por %p25, %p26
      %p28 = scmp.ne.s32.totalorder %s20, %s22
      %p29 = scmp.eq.s32.totalorder %s17, 1
      %p30 = por %p28, %p29
      %p31 = scmp.ne.s32.totalorder %s22, %s23
      %p32 = scmp.eq.s32.totalorder %s17, 0
      %p33 = por %p31, %p32
      %p34 = scmp.ne.s32.totalorder %s22, %s23
      %p35 = scmp.eq.s32.totalorder %s18, 1
      %p36 = por %p34, %p35
      %p38 = scmp.ne.s32.totalorder %s23, %s37
      %p39 = scmp.eq.s32.totalorder %s18, 0
      %p40 = por %p38, %p39
      %s42 = sadd.s32 %s41, 1
      %p45 = scmp.eq.s32.totalorder %s12, 1
      %p46 = scmp.ne.s32.totalorder %s41, %s43
      %p47 = scmp.eq.s32.totalorder %s12, 0
      %p48 = por %p46, %p47
      %p49 = scmp.ne.s32.totalorder %s41, %s43
      %p50 = scmp.eq.s32.totalorder %s17, 1
      %p51 = por %p49, %p50
      %p52 = scmp.ne.s32.totalorder %s43, %s44
      %p53 = scmp.eq.s32.totalorder %s17, 0
      %p54 = por %p52, %p53
      %p55 = scmp.ne.s32.totalorder %s43, %s44
      %p56 = scmp.eq.s32.totalorder %s18, 1
      %p57 = por %p55, %p56
      %p59 = scmp.ne.s32.totalorder %s44, %s58
      %p60 = scmp.eq.s32.totalorder %s18, 0
      %p61 = por %p59, %p60
      %s62 = ssub.s32 %s12, %s19
      %p63 = scmp.eq.s32.totalorder %s62, 0
      %s65 = sadd.s32 %s64, 1
      %s66 = scalar_select %p63, %s64, %s65
      %p69 = pneg %p63
      %p70 = scmp.eq.s32.totalorder %s12, 1
      %p71 = por %p69, %p70
      %p72 = scmp.ne.s32.totalorder %s64, %s67
      %p73 = scmp.eq.s32.totalorder %s12, 0
      %p74 = por %p72, %p73
      %p75 = scmp.ne.s32.totalorder %s64, %s67
      %p76 = scmp.eq.s32.totalorder %s17, 1
      %p77 = por %p75, %p76
      %p78 = scmp.ne.s32.totalorder %s67, %s68
      %p79 = scmp.eq.s32.totalorder %s17, 0
      %p80 = por %p78, %p79
      %p81 = scmp.ne.s32.totalorder %s67, %s68
      %p82 = scmp.eq.s32.totalorder %s18, 1
      %p83 = por %p81, %p82
      %p85 = scmp.ne.s32.totalorder %s68, %s84
      %p86 = scmp.eq.s32.totalorder %s18, 0
      %p87 = por %p85, %p86
      %p88 = scmp.le.s32.totalorder 1, %s12
      %p89 = scmp.lt.s32.totalorder %s12, 3
      %p90 = pnand %p88, %p89
      %p91 = pneg %p90
      // Predicated region
      $region9: #{tpu_custom_call.1} parent=5 // pred_check
        _
      $region10: #{tpu_custom_call.1} parent=5 // pred_check_branch
        %93 = sbr.rel (%p90) target = $region12
      $region11: #{tpu_custom_call.1} parent=5 // pred_region
        %s94 = ssub.s32 %s12, 1
        // Predicated region
        $region13: #{tpu_custom_call.1} parent=11 // pred_check
          %p95 = pneg %p33
        $region14: #{tpu_custom_call.1} parent=11 // pred_check_branch
          %97 = sbr.rel (%p95) target = $region16
        $region15: #{tpu_custom_call.1} parent=11 // pred_region
          %s99 = ssub.s32 32, 32
          %100 = vsyncadd [#allocation4], %s99
          %s102 = sshll.u32 [#allocation3], 4
          %s103 = int_to_ptr.vmem [resolvable:$true] %s102
          %105 = dma.hbm_to_vmem [thread:$0]  %s0, 32, %s103, [#allocation4]
        $region16: #{tpu_custom_call.1} parent=11 // pred_fallthru
          _
        // Predicated region
        $region17: #{tpu_custom_call.1} parent=11 // pred_check
          %p106 = pneg %p54
        $region18: #{tpu_custom_call.1} parent=11 // pred_check_branch
          %108 = sbr.rel (%p106) target = $region20
        $region19: #{tpu_custom_call.1} parent=11 // pred_region
          _
        $region20: #{tpu_custom_call.1} parent=11 // pred_fallthru
          _
      $region12: #{tpu_custom_call.1} parent=5 // pred_fallthru
        _
      %p109 = scmp.lt.s32.totalorder %s12, 2
      // Predicated region
      $region21: #{tpu_custom_call.1} parent=5 // pred_check
        %p110 = pneg %p109
      $region22: #{tpu_custom_call.1} parent=5 // pred_check_branch
        %112 = sbr.rel (%p110) target = $region24
      $region23: #{tpu_custom_call.1} parent=5 // pred_region
        _
      $region24: #{tpu_custom_call.1} parent=5 // pred_fallthru
        _
      %p113 = scmp.le.s32.totalorder 1, %s12
      %p114 = scmp.lt.s32.totalorder %s12, 3
      %p115 = pnand %p113, %p114
      %p116 = pneg %p115
      // Predicated region
      $region25: #{tpu_custom_call.1} parent=5 // pred_check
        _
      $region26: #{tpu_custom_call.1} parent=5 // pred_check_branch
        %118 = sbr.rel (%p115) target = $region28
      $region27: #{tpu_custom_call.1} parent=5 // pred_region
        %s119 = ssub.s32 %s12, 1
        // Predicated region
        $region29: #{tpu_custom_call.1} parent=27 // pred_check
          %p120 = pneg %p33
        $region30: #{tpu_custom_call.1} parent=27 // pred_check_branch
          %122 = sbr.rel (%p120) target = $region32
        $region31: #{tpu_custom_call.1} parent=27 // pred_region
          %123 = dma.done [#allocation4], 32
        $region32: #{tpu_custom_call.1} parent=27 // pred_fallthru
          _
        %p124 = pneg %p33
        %p125 = pneg %p30
        %p126 = pneg %p54
        %p127 = pneg %p51
        %p128 = pneg %p80
        %p129 = pneg %p77
        %s130 = sand.u32 %s67, 1
        %s131 = scalar_lea.sflag [#allocation5], %s130
        %s132 = sand.u32 %s67, 1
        %s133 = smul.addr %s132, 8
        %s134 = scalar_lea.vmem [#allocation6], %s133
        %v137 = vlaneseq
        %v138 = vshrl.u32 %v137, 7
        %v139 = vadd.s32 %v138, 8
        %v140 = vadd.s32 %v138, 16
        %v141 = vadd.s32 %v138, 24
        %v142 = vadd.s32 %v138, 32
        %v143 = vadd.s32 %v138, 40
        %v144 = vadd.s32 %v138, 48
        %v145 = vadd.s32 %v138, 56
        %v146 = vadd.s32 %v138, 64
        %v147 = vadd.s32 %v138, 72
        %v148 = vadd.s32 %v138, 80
        %v149 = vadd.s32 %v138, 88
        %v150 = vadd.s32 %v138, 96
        %v151 = vadd.s32 %v138, 104
        %v152 = vadd.s32 %v138, 112
        %v153 = vadd.s32 %v138, 120
        %v154 = vlaneseq
        %v155 = vand.u32 %v154, 127
        %vm156 = vcmp.le.s32.totalorder %v138, %v155
        %vm157 = vcmp.le.s32.totalorder %v139, %v155
        %vm158 = vcmp.le.s32.totalorder %v140, %v155
        %vm159 = vcmp.le.s32.totalorder %v141, %v155
        %vm160 = vcmp.le.s32.totalorder %v142, %v155
        %vm161 = vcmp.le.s32.totalorder %v143, %v155
        %vm162 = vcmp.le.s32.totalorder %v144, %v155
        %vm163 = vcmp.le.s32.totalorder %v145, %v155
        %vm164 = vcmp.le.s32.totalorder %v146, %v155
        %vm165 = vcmp.le.s32.totalorder %v147, %v155
        %vm166 = vcmp.le.s32.totalorder %v148, %v155
        %vm167 = vcmp.le.s32.totalorder %v149, %v155
        %vm168 = vcmp.le.s32.totalorder %v150, %v155
        %vm169 = vcmp.le.s32.totalorder %v151, %v155
        %vm170 = vcmp.le.s32.totalorder %v152, %v155
        %vm171 = vcmp.le.s32.totalorder %v153, %v155
        %v172 = vsel %vm156, 1, 0
        %v173 = vsel %vm157, 1, 0
        %v174 = vsel %vm158, 1, 0
        %v175 = vsel %vm159, 1, 0
        %v176 = vsel %vm160, 1, 0
        %v177 = vsel %vm161, 1, 0
        %v178 = vsel %vm162, 1, 0
        %v179 = vsel %vm163, 1, 0
        %v180 = vsel %vm164, 1, 0
        %v181 = vsel %vm165, 1, 0
        %v182 = vsel %vm166, 1, 0
        %v183 = vsel %vm167, 1, 0
        %v184 = vsel %vm168, 1, 0
        %v185 = vsel %vm169, 1, 0
        %v186 = vsel %vm170, 1, 0
        %v187 = vsel %vm171, 1, 0
        %v188 = vcvt.s32.f32 %v172
        %v189 = vcvt.s32.f32 %v173
        %v190 = vcvt.s32.f32 %v174
        %v191 = vcvt.s32.f32 %v175
        %v192 = vcvt.s32.f32 %v176
        %v193 = vcvt.s32.f32 %v177
        %v194 = vcvt.s32.f32 %v178
        %v195 = vcvt.s32.f32 %v179
        %v196 = vcvt.s32.f32 %v180
        %v197 = vcvt.s32.f32 %v181
        %v198 = vcvt.s32.f32 %v182
        %v199 = vcvt.s32.f32 %v183
        %v200 = vcvt.s32.f32 %v184
        %v201 = vcvt.s32.f32 %v185
        %v202 = vcvt.s32.f32 %v186
        %v203 = vcvt.s32.f32 %v187
        %v204 = vpack.c.bf16 %v189, %v188
        %v205 = vpack.c.bf16 %v191, %v190
        %v206 = vpack.c.bf16 %v193, %v192
        %v207 = vpack.c.bf16 %v195, %v194
        %v208 = vpack.c.bf16 %v197, %v196
        %v209 = vpack.c.bf16 %v199, %v198
        %v210 = vpack.c.bf16 %v201, %v200
        %v211 = vpack.c.bf16 %v203, %v202
        %v212 = vld [vmem:[#allocation3] sm:$0x3]
        %vm213 = vcmp.ge.s32.totalorder %v212, 0
        %vm214 = vcmp.eq.s32.totalorder %v212, 1
        %vm215 = vcmp.ge.s32.totalorder %v212, 12
        %vm216 = vcmp.le.s32.totalorder %v212, 13
        %vm217 = vmand %vm215, %vm216
        %vm218 = vmor %vm214, %vm217
        %vm219 = vcmp.ge.s32.totalorder %v212, 35
        %vm220 = vcmp.le.s32.totalorder %v212, 50
        %vm221 = vmand %vm219, %vm220
        %vm222 = vmor %vm218, %vm221
        %vm223 = vcmp.ge.s32.totalorder %v212, 61
        %vm224 = vcmp.le.s32.totalorder %v212, 67
        %vm225 = vmand %vm223, %vm224
        %vm226 = vmor %vm222, %vm225
        %vm227 = vcmp.ge.s32.totalorder %v212, 94
        %vm228 = vcmp.le.s32.totalorder %v212, 99
        %vm229 = vmand %vm227, %vm228
        %vm230 = vmor %vm226, %vm229
        %vm231 = vcmp.ge.s32.totalorder %v212, 126
        %vm232 = vcmp.le.s32.totalorder %v212, 129
        %vm233 = vmand %vm231, %vm232
        %vm234 = vmor %vm230, %vm233
        %v235 = vsel %vm234, 1, 0
        %v236 = vcvt.s32.f32 %v235
        %v237 = vpack.c.bf16 %v236, %v236
        %238 = vmatprep.subr.bf16.mxu0 0
        %239 = vmatpush1.bf16.msra.mxu0 %v211
        %240 = vmatprep.subr.bf16.mxu0 0
        %241 = vmatpush1.bf16.msra.mxu0 %v210
        %242 = vmatprep.subr.bf16.mxu0 0
        %243 = vmatpush1.bf16.msra.mxu0 %v209
        %244 = vmatprep.subr.bf16.mxu0 0
        %245 = vmatpush1.bf16.msra.mxu0 %v208
        %246 = vmatprep.subr.bf16.mxu0 0
        %247 = vmatpush1.bf16.msra.mxu0 %v207
        %248 = vmatprep.subr.bf16.mxu0 0
        %249 = vmatpush1.bf16.msra.mxu0 %v206
        %250 = vmatprep.subr.bf16.mxu0 0
        %251 = vmatpush1.bf16.msra.mxu0 %v205
        %252 = vmatprep.subr.bf16.mxu0 0
        %253 = vmatpush1.bf16.msra.mxu0 %v204
        %254 = vmatprep.subr.bf16.mxu0 0
        %255 = vmatpush2.bf16.msra.mxu0 0
        %256 = vmatprep.subr.bf16.mxu0 0
        %257 = vmatpush2.bf16.msra.mxu0 0
        %258 = vmatprep.subr.bf16.mxu0 0
        %259 = vmatpush2.bf16.msra.mxu0 0
        %260 = vmatprep.subr.bf16.mxu0 0
        %261 = vmatpush2.bf16.msra.mxu0 0
        %262 = vmatprep.subr.bf16.mxu0 0
        %263 = vmatpush2.bf16.msra.mxu0 0
        %264 = vmatprep.subr.bf16.mxu0 0
        %265 = vmatpush2.bf16.msra.mxu0 0
        %266 = vmatprep.subr.bf16.mxu0 0
        %267 = vmatpush2.bf16.msra.mxu0 0
        %268 = vmatprep.subr.bf16.mxu0 0
        %269 = vmatpush2.bf16.msra.mxu0 0
        %270 = vmatprep.mubr.bf16.mxu0 0
        %271 = vmatmul.mubr.bf16.gmra.mxu0 %v237
        %v272 = vpop.f32.mrf.mxu0
        %v273 = vadd.f32 0.0, %v272
        %v274 = vpop.f32.mrf.mxu0
        %v275 = vpop.f32.mrf.mxu0
        %v276 = vpop.f32.mrf.mxu0
        %277 = vdwg.mxu0
        %v278 = vld [vmem:[%s1] sm:$0x1]
        %v279 = vpack.c.bf16 %v273, %v273
        %281 = vrot.lane.b32.xlu0 %v279, 1
        %v282 = vpop.permute.xlu0 %281
        %vm283 = vcmask 15360
        %v285 = vsel %vm283, %v278, 0
        %vm287 = vcmask 1040384
        %v289 = vsel %vm287, %v282, 0
        %291 = vmatprep.subr.bf16.mxu0 0
        %292 = vmatpush1.bf16.msra.mxu0 0
        %293 = vmatprep.subr.bf16.mxu0 0
        %294 = vmatpush1.bf16.msra.mxu0 0
        %295 = vmatprep.subr.bf16.mxu0 0
        %296 = vmatpush1.bf16.msra.mxu0 0
        %297 = vmatprep.subr.bf16.mxu0 0
        %298 = vmatpush1.bf16.msra.mxu0 0
        %299 = vmatprep.subr.bf16.mxu0 0
        %300 = vmatpush1.bf16.msra.mxu0 0
        %301 = vmatprep.subr.bf16.mxu0 0
        %302 = vmatpush1.bf16.msra.mxu0 0
        %303 = vmatprep.subr.bf16.mxu0 0
        %304 = vmatpush1.bf16.msra.mxu0 0
        %305 = vmatprep.subr.bf16.mxu0 0
        %306 = vmatpush1.bf16.msra.mxu0 %v289
        %307 = vmatprep.subr.bf16.mxu0 0
        %308 = vmatpush2.bf16.msra.mxu0 0
        %309 = vmatprep.subr.bf16.mxu0 0
        %310 = vmatpush2.bf16.msra.mxu0 0
        %311 = vmatprep.subr.bf16.mxu0 0
        %312 = vmatpush2.bf16.msra.mxu0 0
        %313 = vmatprep.subr.bf16.mxu0 0
        %314 = vmatpush2.bf16.msra.mxu0 0
        %315 = vmatprep.subr.bf16.mxu0 0
        %316 = vmatpush2.bf16.msra.mxu0 0
        %317 = vmatprep.subr.bf16.mxu0 0
        %318 = vmatpush2.bf16.msra.mxu0 0
        %319 = vmatprep.subr.bf16.mxu0 0
        %320 = vmatpush2.bf16.msra.mxu0 0
        %321 = vmatprep.subr.bf16.mxu0 0
        %322 = vmatpush2.bf16.msra.mxu0 0
        %323 = vmatprep.mubr.bf16.mxu0 0
        %324 = vmatmul.mubr.bf16.gmra.mxu0 %v285
        %v325 = vpop.f32.mrf.mxu0
        %v326 = vadd.f32 0.0, %v325
        %v327 = vpop.f32.mrf.mxu0
        %v328 = vpop.f32.mrf.mxu0
        %v329 = vpop.f32.mrf.mxu0
        %330 = vdwg.mxu0
        %332 = vset.pattern.permute.xlu0 0
        %333 = vperm.xlu0 %332, %v326
        %v334 = vpop.permute.xlu0 %333
        %v336 = vadd.f32 %v273, %v334
        %vm337 = vcmask 1041408
        %v338 = vsel %vm337, %v336, -inf
        %339 = vmax.xlane.f32.xlu0 %v338
        %v340 = vpop.xlane.xlu0 %339
        %v341 = vrot.slane %v340, 4
        %v342 = vmax.f32 %v340, %v341
        %v343 = vrot.slane %v342, 2
        %v344 = vmax.f32 %v342, %v343
        %v345 = vrot.slane %v344, 1
        %v346 = vmax.f32 %v344, %v345
        %s347 = vtos %v346
        %v348 = vsel %vm213, %v336, 1e+09
        %349 = vst [vmem:[#allocation2] sm:$0x3] %v348
        %350 = vst [vmem:[%s134] sm:$0xff] 0.0
        %s351 = smul.u32 %s17, 128
        %s352 = scvt.s32.f32 %s351
        %p353 = scmp.le.f32.partialorder %s352, %s347
        // Predicated region
        $region33: #{tpu_custom_call.1} parent=27 // pred_check
          %p354 = pneg %p353
        $region34: #{tpu_custom_call.1} parent=27 // pred_check_branch
          %356 = sbr.rel (%p354) target = $region36
        $region35: #{tpu_custom_call.1} parent=27 // pred_region
          %v357 = vstv %s351
          %v358 = vadd.s32 %v138, %v357
          %v359 = vadd.s32 %v139, %v357
          %v360 = vadd.s32 %v140, %v357
          %v361 = vadd.s32 %v141, %v357
          %v362 = vadd.s32 %v142, %v357
          %v363 = vadd.s32 %v143, %v357
          %v364 = vadd.s32 %v144, %v357
          %v365 = vadd.s32 %v145, %v357
          %v366 = vadd.s32 %v146, %v357
          %v367 = vadd.s32 %v147, %v357
          %v368 = vadd.s32 %v148, %v357
          %v369 = vadd.s32 %v149, %v357
          %v370 = vadd.s32 %v150, %v357
          %v371 = vadd.s32 %v151, %v357
          %v372 = vadd.s32 %v152, %v357
          %v373 = vadd.s32 %v153, %v357
          %v374 = vcvt.s32.f32 %v358
          %v375 = vcvt.s32.f32 %v359
          %v376 = vcvt.s32.f32 %v360
          %v377 = vcvt.s32.f32 %v361
          %v378 = vcvt.s32.f32 %v362
          %v379 = vcvt.s32.f32 %v363
          %v380 = vcvt.s32.f32 %v364
          %v381 = vcvt.s32.f32 %v365
          %v382 = vcvt.s32.f32 %v366
          %v383 = vcvt.s32.f32 %v367
          %v384 = vcvt.s32.f32 %v368
          %v385 = vcvt.s32.f32 %v369
          %v386 = vcvt.s32.f32 %v370
          %v387 = vcvt.s32.f32 %v371
          %v388 = vcvt.s32.f32 %v372
          %v389 = vcvt.s32.f32 %v373
          %v390 = vld [vmem:[#allocation2] sm:$0x1]
          %v391 = vlaneseq
          %v392 = vshrl.u32 %v391, 7
          %v393 = vsub.s32 0, %v392
          %v394 = vrot.slane %v390, %v393
          %vm395 = vcmp.le.f32.partialorder %v394, %v374
          %vm396 = vcmp.le.f32.partialorder %v394, %v375
          %vm397 = vcmp.le.f32.partialorder %v394, %v376
          %vm398 = vcmp.le.f32.partialorder %v394, %v377
          %vm399 = vcmp.le.f32.partialorder %v394, %v378
          %vm400 = vcmp.le.f32.partialorder %v394, %v379
          %vm401 = vcmp.le.f32.partialorder %v394, %v380
          %vm402 = vcmp.le.f32.partialorder %v394, %v381
          %vm403 = vcmp.le.f32.partialorder %v394, %v382
          %vm404 = vcmp.le.f32.partialorder %v394, %v383
          %vm405 = vcmp.le.f32.partialorder %v394, %v384
          %vm406 = vcmp.le.f32.partialorder %v394, %v385
          %vm407 = vcmp.le.f32.partialorder %v394, %v386
          %vm408 = vcmp.le.f32.partialorder %v394, %v387
          %vm409 = vcmp.le.f32.partialorder %v394, %v388
          %vm410 = vcmp.le.f32.partialorder %v394, %v389
          %v411 = vsel %vm395, 1, 0
          %v412 = vsel %vm396, 1, 0
          %v413 = vsel %vm397, 1, 0
          %v414 = vsel %vm398, 1, 0
          %v415 = vsel %vm399, 1, 0
          %v416 = vsel %vm400, 1, 0
          %v417 = vsel %vm401, 1, 0
          %v418 = vsel %vm402, 1, 0
          %v419 = vsel %vm403, 1, 0
          %v420 = vsel %vm404, 1, 0
          %v421 = vsel %vm405, 1, 0
          %v422 = vsel %vm406, 1, 0
          %v423 = vsel %vm407, 1, 0
          %v424 = vsel %vm408, 1, 0
          %v425 = vsel %vm409, 1, 0
          %v426 = vsel %vm410, 1, 0
          %v427 = vcvt.s32.f32 %v411
          %v428 = vcvt.s32.f32 %v412
          %v429 = vcvt.s32.f32 %v413
          %v430 = vcvt.s32.f32 %v414
          %v431 = vcvt.s32.f32 %v415
          %v432 = vcvt.s32.f32 %v416
          %v433 = vcvt.s32.f32 %v417
          %v434 = vcvt.s32.f32 %v418
          %v435 = vcvt.s32.f32 %v419
          %v436 = vcvt.s32.f32 %v420
          %v437 = vcvt.s32.f32 %v421
          %v438 = vcvt.s32.f32 %v422
          %v439 = vcvt.s32.f32 %v423
          %v440 = vcvt.s32.f32 %v424
          %v441 = vcvt.s32.f32 %v425
          %v442 = vcvt.s32.f32 %v426
          %v443 = vadd.f32 %v427, 0.0
          %v444 = vadd.f32 %v428, 0.0
          %v445 = vadd.f32 %v429, 0.0
          %v446 = vadd.f32 %v430, 0.0
          %v447 = vadd.f32 %v431, 0.0
          %v448 = vadd.f32 %v432, 0.0
          %v449 = vadd.f32 %v433, 0.0
          %v450 = vadd.f32 %v434, 0.0
          %v451 = vadd.f32 %v435, 0.0
          %v452 = vadd.f32 %v436, 0.0
          %v453 = vadd.f32 %v437, 0.0
          %v454 = vadd.f32 %v438, 0.0
          %v455 = vadd.f32 %v439, 0.0
          %v456 = vadd.f32 %v440, 0.0
          %v457 = vadd.f32 %v441, 0.0
          %v458 = vadd.f32 %v442, 0.0
          %v459 = vld [vmem:[#allocation2 + $0x1] sm:$0x1]
          %v460 = vlaneseq
          %v461 = vshrl.u32 %v460, 7
          %v462 = vsub.s32 0, %v461
          %v463 = vrot.slane %v459, %v462
          %vm464 = vcmp.le.f32.partialorder %v463, %v374
          %vm465 = vcmp.le.f32.partialorder %v463, %v375
          %vm466 = vcmp.le.f32.partialorder %v463, %v376
          %vm467 = vcmp.le.f32.partialorder %v463, %v377
          %vm468 = vcmp.le.f32.partialorder %v463, %v378
          %vm469 = vcmp.le.f32.partialorder %v463, %v379
          %vm470 = vcmp.le.f32.partialorder %v463, %v380
          %vm471 = vcmp.le.f32.partialorder %v463, %v381
          %vm472 = vcmp.le.f32.partialorder %v463, %v382
          %vm473 = vcmp.le.f32.partialorder %v463, %v383
          %vm474 = vcmp.le.f32.partialorder %v463, %v384
          %vm475 = vcmp.le.f32.partialorder %v463, %v385
          %vm476 = vcmp.le.f32.partialorder %v463, %v386
          %vm477 = vcmp.le.f32.partialorder %v463, %v387
          %vm478 = vcmp.le.f32.partialorder %v463, %v388
          %vm479 = vcmp.le.f32.partialorder %v463, %v389
          %v480 = vsel %vm464, 1, 0
          %v481 = vsel %vm465, 1, 0
          %v482 = vsel %vm466, 1, 0
          %v483 = vsel %vm467, 1, 0
          %v484 = vsel %vm468, 1, 0
          %v485 = vsel %vm469, 1, 0
          %v486 = vsel %vm470, 1, 0
          %v487 = vsel %vm471, 1, 0
          %v488 = vsel %vm472, 1, 0
          %v489 = vsel %vm473, 1, 0
          %v490 = vsel %vm474, 1, 0
          %v491 = vsel %vm475, 1, 0
          %v492 = vsel %vm476, 1, 0
          %v493 = vsel %vm477, 1, 0
          %v494 = vsel %vm478, 1, 0
          %v495 = vsel %vm479, 1, 0
          %v496 = vcvt.s32.f32 %v480
          %v497 = vcvt.s32.f32 %v481
          %v498 = vcvt.s32.f32 %v482
          %v499 = vcvt.s32.f32 %v483
          %v500 = vcvt.s32.f32 %v484
          %v501 = vcvt.s32.f32 %v485
          %v502 = vcvt.s32.f32 %v486
          %v503 = vcvt.s32.f32 %v487
          %v504 = vcvt.s32.f32 %v488
          %v505 = vcvt.s32.f32 %v489
          %v506 = vcvt.s32.f32 %v490
          %v507 = vcvt.s32.f32 %v491
          %v508 = vcvt.s32.f32 %v492
          %v509 = vcvt.s32.f32 %v493
          %v510 = vcvt.s32.f32 %v494
          %v511 = vcvt.s32.f32 %v495
          %v512 = vadd.f32 %v443, %v496
          %v513 = vadd.f32 %v444, %v497
          %v514 = vadd.f32 %v445, %v498
          %v515 = vadd.f32 %v446, %v499
          %v516 = vadd.f32 %v447, %v500
          %v517 = vadd.f32 %v448, %v501
          %v518 = vadd.f32 %v449, %v502
          %v519 = vadd.f32 %v450, %v503
          %v520 = vadd.f32 %v451, %v504
          %v521 = vadd.f32 %v452, %v505
          %v522 = vadd.f32 %v453, %v506
          %v523 = vadd.f32 %v454, %v507
          %v524 = vadd.f32 %v455, %v508
          %v525 = vadd.f32 %v456, %v509
          %v526 = vadd.f32 %v457, %v510
          %v527 = vadd.f32 %v458, %v511
          %528 = vadd.xlane.f32.xlu0 %v512
          %v529 = vpop.xlane.xlu0 %528
          %530 = vadd.xlane.f32.xlu0 %v513
          %v531 = vpop.xlane.xlu0 %530
          %532 = vadd.xlane.f32.xlu0 %v514
          %v533 = vpop.xlane.xlu0 %532
          %534 = vadd.xlane.f32.xlu0 %v515
          %v535 = vpop.xlane.xlu0 %534
          %536 = vadd.xlane.f32.xlu0 %v516
          %v537 = vpop.xlane.xlu0 %536
          %538 = vadd.xlane.f32.xlu0 %v517
          %v539 = vpop.xlane.xlu0 %538
          %540 = vadd.xlane.f32.xlu0 %v518
          %v541 = vpop.xlane.xlu0 %540
          %542 = vadd.xlane.f32.xlu0 %v519
          %v543 = vpop.xlane.xlu0 %542
          %544 = vadd.xlane.f32.xlu0 %v520
          %v545 = vpop.xlane.xlu0 %544
          %546 = vadd.xlane.f32.xlu0 %v521
          %v547 = vpop.xlane.xlu0 %546
          %548 = vadd.xlane.f32.xlu0 %v522
          %v549 = vpop.xlane.xlu0 %548
          %550 = vadd.xlane.f32.xlu0 %v523
          %v551 = vpop.xlane.xlu0 %550
          %552 = vadd.xlane.f32.xlu0 %v524
          %v553 = vpop.xlane.xlu0 %552
          %554 = vadd.xlane.f32.xlu0 %v525
          %v555 = vpop.xlane.xlu0 %554
          %556 = vadd.xlane.f32.xlu0 %v526
          %v557 = vpop.xlane.xlu0 %556
          %558 = vadd.xlane.f32.xlu0 %v527
          %v559 = vpop.xlane.xlu0 %558
          %v560 = vld [vmem:[#allocation2] sm:$0x3]
          %v561 = vstv %s352
          %vm562 = vcmp.lt.f32.partialorder %v560, %v561
          %v563 = vsel %vm562, 1, 0
          %v564 = vcvt.s32.f32 %v563
          %v565 = vsel %vm337, %v564, 0.0
          %566 = vadd.xlane.f32.xlu0 %v565
          %v567 = vpop.xlane.xlu0 %566
          %v568 = vrot.slane %v567, 4
          %v569 = vadd.f32 %v567, %v568
          %v570 = vrot.slane %v569, 2
          %v571 = vadd.f32 %v569, %v570
          %v572 = vrot.slane %v571, 1
          %v573 = vadd.f32 %v571, %v572
          %s574 = vtos %v573
          %v575 = vrot.slane %v529, 7
          %v576 = vrot.slane %v531, 7
          %v577 = vrot.slane %v533, 7
          %v578 = vrot.slane %v535, 7
          %v579 = vrot.slane %v537, 7
          %v580 = vrot.slane %v539, 7
          %v581 = vrot.slane %v541, 7
          %v582 = vrot.slane %v543, 7
          %v583 = vrot.slane %v545, 7
          %v584 = vrot.slane %v547, 7
          %v585 = vrot.slane %v549, 7
          %v586 = vrot.slane %v551, 7
          %v587 = vrot.slane %v553, 7
          %v588 = vrot.slane %v555, 7
          %v589 = vrot.slane %v557, 7
          %v590 = vrot.slane %v559, 7
          %vm591 = vcmp.lt.s32.totalorder %v138, 1
          %v592 = vsel %vm591, %v589, %v590
          %v593 = vsel %vm591, %v588, %v589
          %v594 = vsel %vm591, %v587, %v588
          %v595 = vsel %vm591, %v586, %v587
          %v596 = vsel %vm591, %v585, %v586
          %v597 = vsel %vm591, %v584, %v585
          %v598 = vsel %vm591, %v583, %v584
          %v599 = vsel %vm591, %v582, %v583
          %v600 = vsel %vm591, %v581, %v582
          %v601 = vsel %vm591, %v580, %v581
          %v602 = vsel %vm591, %v579, %v580
          %v603 = vsel %vm591, %v578, %v579
          %v604 = vsel %vm591, %v577, %v578
          %v605 = vsel %vm591, %v576, %v577
          %v606 = vsel %vm591, %v575, %v576
          %v607 = vsel %vm591, %v590, %v575
          %vm608 = vcmp.eq.s32.totalorder %v138, 0
          %vm609 = vcmp.eq.s32.totalorder %v139, 0
          %vm610 = vcmp.eq.s32.totalorder %v140, 0
          %vm611 = vcmp.eq.s32.totalorder %v141, 0
          %vm612 = vcmp.eq.s32.totalorder %v142, 0
          %vm613 = vcmp.eq.s32.totalorder %v143, 0
          %vm614 = vcmp.eq.s32.totalorder %v144, 0
          %vm615 = vcmp.eq.s32.totalorder %v145, 0
          %vm616 = vcmp.eq.s32.totalorder %v146, 0
          %vm617 = vcmp.eq.s32.totalorder %v147, 0
          %vm618 = vcmp.eq.s32.totalorder %v148, 0
          %vm619 = vcmp.eq.s32.totalorder %v149, 0
          %vm620 = vcmp.eq.s32.totalorder %v150, 0
          %vm621 = vcmp.eq.s32.totalorder %v151, 0
          %vm622 = vcmp.eq.s32.totalorder %v152, 0
          %vm623 = vcmp.eq.s32.totalorder %v153, 0
          %v624 = vstv %s574
          %v625 = vsel %vm608, %v624, %v607
          %v626 = vsel %vm609, %v624, %v606
          %v627 = vsel %vm610, %v624, %v605
          %v628 = vsel %vm611, %v624, %v604
          %v629 = vsel %vm612, %v624, %v603
          %v630 = vsel %vm613, %v624, %v602
          %v631 = vsel %vm614, %v624, %v601
          %v632 = vsel %vm615, %v624, %v600
          %v633 = vsel %vm616, %v624, %v599
          %v634 = vsel %vm617, %v624, %v598
          %v635 = vsel %vm618, %v624, %v597
          %v636 = vsel %vm619, %v624, %v596
          %v637 = vsel %vm620, %v624, %v595
          %v638 = vsel %vm621, %v624, %v594
          %v639 = vsel %vm622, %v624, %v593
          %v640 = vsel %vm623, %v624, %v592
          %v641 = vsub.f32 %v529, %v625
          %v642 = vsub.f32 %v531, %v626
          %v643 = vsub.f32 %v533, %v627
          %v644 = vsub.f32 %v535, %v628
          %v645 = vsub.f32 %v537, %v629
          %v646 = vsub.f32 %v539, %v630
          %v647 = vsub.f32 %v541, %v631
          %v648 = vsub.f32 %v543, %v632
          %v649 = vsub.f32 %v545, %v633
          %v650 = vsub.f32 %v547, %v634
          %v651 = vsub.f32 %v549, %v635
          %v652 = vsub.f32 %v551, %v636
          %v653 = vsub.f32 %v553, %v637
          %v654 = vsub.f32 %v555, %v638
          %v655 = vsub.f32 %v557, %v639
          %v656 = vsub.f32 %v559, %v640
          %v657 = vmul.f32 %v641, 0.5
          %v658 = vmul.f32 %v642, 0.5
          %v659 = vmul.f32 %v643, 0.5
          %v660 = vmul.f32 %v644, 0.5
          %v661 = vmul.f32 %v645, 0.5
          %v662 = vmul.f32 %v646, 0.5
          %v663 = vmul.f32 %v647, 0.5
          %v664 = vmul.f32 %v648, 0.5
          %v665 = vmul.f32 %v649, 0.5
          %v666 = vmul.f32 %v650, 0.5
          %v667 = vmul.f32 %v651, 0.5
          %v668 = vmul.f32 %v652, 0.5
          %v669 = vmul.f32 %v653, 0.5
          %v670 = vmul.f32 %v654, 0.5
          %v671 = vmul.f32 %v655, 0.5
          %v672 = vmul.f32 %v656, 0.5
          %v673 = vceil.f32 %v657
          %v674 = vceil.f32 %v658
          %v675 = vceil.f32 %v659
          %v676 = vceil.f32 %v660
          %v677 = vceil.f32 %v661
          %v678 = vceil.f32 %v662
          %v679 = vceil.f32 %v663
          %v680 = vceil.f32 %v664
          %v681 = vceil.f32 %v665
          %v682 = vceil.f32 %v666
          %v683 = vceil.f32 %v667
          %v684 = vceil.f32 %v668
          %v685 = vceil.f32 %v669
          %v686 = vceil.f32 %v670
          %v687 = vceil.f32 %v671
          %v688 = vceil.f32 %v672
          %v689 = vcvt.f32.s32.to.zero.pseudo %v625
          %v690 = vcvt.f32.s32.to.zero.pseudo %v626
          %v691 = vcvt.f32.s32.to.zero.pseudo %v627
          %v692 = vcvt.f32.s32.to.zero.pseudo %v628
          %v693 = vcvt.f32.s32.to.zero.pseudo %v629
          %v694 = vcvt.f32.s32.to.zero.pseudo %v630
          %v695 = vcvt.f32.s32.to.zero.pseudo %v631
          %v696 = vcvt.f32.s32.to.zero.pseudo %v632
          %v697 = vcvt.f32.s32.to.zero.pseudo %v633
          %v698 = vcvt.f32.s32.to.zero.pseudo %v634
          %v699 = vcvt.f32.s32.to.zero.pseudo %v635
          %v700 = vcvt.f32.s32.to.zero.pseudo %v636
          %v701 = vcvt.f32.s32.to.zero.pseudo %v637
          %v702 = vcvt.f32.s32.to.zero.pseudo %v638
          %v703 = vcvt.f32.s32.to.zero.pseudo %v639
          %v704 = vcvt.f32.s32.to.zero.pseudo %v640
          %705 = vset.pattern.permute.xlu0 0
          %706 = vperm.xlu0 %705, %v689
          %v707 = vpop.permute.xlu0 %706
          %708 = vset.pattern.permute.xlu0 0
          %709 = vperm.xlu0 %708, %v690
          %v710 = vpop.permute.xlu0 %709
          %711 = vset.pattern.permute.xlu0 0
          %712 = vperm.xlu0 %711, %v691
          %v713 = vpop.permute.xlu0 %712
          %714 = vset.pattern.permute.xlu0 0
          %715 = vperm.xlu0 %714, %v692
          %v716 = vpop.permute.xlu0 %715
          %717 = vset.pattern.permute.xlu0 0
          %718 = vperm.xlu0 %717, %v693
          %v719 = vpop.permute.xlu0 %718
          %720 = vset.pattern.permute.xlu0 0
          %721 = vperm.xlu0 %720, %v694
          %v722 = vpop.permute.xlu0 %721
          %723 = vset.pattern.permute.xlu0 0
          %724 = vperm.xlu0 %723, %v695
          %v725 = vpop.permute.xlu0 %724
          %726 = vset.pattern.permute.xlu0 0
          %727 = vperm.xlu0 %726, %v696
          %v728 = vpop.permute.xlu0 %727
          %729 = vset.pattern.permute.xlu0 0
          %730 = vperm.xlu0 %729, %v697
          %v731 = vpop.permute.xlu0 %730
          %732 = vset.pattern.permute.xlu0 0
          %733 = vperm.xlu0 %732, %v698
          %v734 = vpop.permute.xlu0 %733
          %735 = vset.pattern.permute.xlu0 0
          %736 = vperm.xlu0 %735, %v699
          %v737 = vpop.permute.xlu0 %736
          %738 = vset.pattern.permute.xlu0 0
          %739 = vperm.xlu0 %738, %v700
          %v740 = vpop.permute.xlu0 %739
          %741 = vset.pattern.permute.xlu0 0
          %742 = vperm.xlu0 %741, %v701
          %v743 = vpop.permute.xlu0 %742
          %744 = vset.pattern.permute.xlu0 0
          %745 = vperm.xlu0 %744, %v702
          %v746 = vpop.permute.xlu0 %745
          %747 = vset.pattern.permute.xlu0 0
          %748 = vperm.xlu0 %747, %v703
          %v749 = vpop.permute.xlu0 %748
          %750 = vset.pattern.permute.xlu0 0
          %751 = vperm.xlu0 %750, %v704
          %v752 = vpop.permute.xlu0 %751
          %v753 = vsub.s32 %v155, %v707
          %v754 = vsub.s32 %v155, %v710
          %v755 = vsub.s32 %v155, %v713
          %v756 = vsub.s32 %v155, %v716
          %v757 = vsub.s32 %v155, %v719
          %v758 = vsub.s32 %v155, %v722
          %v759 = vsub.s32 %v155, %v725
          %v760 = vsub.s32 %v155, %v728
          %v761 = vsub.s32 %v155, %v731
          %v762 = vsub.s32 %v155, %v734
          %v763 = vsub.s32 %v155, %v737
          %v764 = vsub.s32 %v155, %v740
          %v765 = vsub.s32 %v155, %v743
          %v766 = vsub.s32 %v155, %v746
          %v767 = vsub.s32 %v155, %v749
          %v768 = vsub.s32 %v155, %v752
          %v769 = vcvt.f32.s32.to.zero.pseudo %v673
          %v770 = vcvt.f32.s32.to.zero.pseudo %v674
          %v771 = vcvt.f32.s32.to.zero.pseudo %v675
          %v772 = vcvt.f32.s32.to.zero.pseudo %v676
          %v773 = vcvt.f32.s32.to.zero.pseudo %v677
          %v774 = vcvt.f32.s32.to.zero.pseudo %v678
          %v775 = vcvt.f32.s32.to.zero.pseudo %v679
          %v776 = vcvt.f32.s32.to.zero.pseudo %v680
          %v777 = vcvt.f32.s32.to.zero.pseudo %v681
          %v778 = vcvt.f32.s32.to.zero.pseudo %v682
          %v779 = vcvt.f32.s32.to.zero.pseudo %v683
          %v780 = vcvt.f32.s32.to.zero.pseudo %v684
          %v781 = vcvt.f32.s32.to.zero.pseudo %v685
          %v782 = vcvt.f32.s32.to.zero.pseudo %v686
          %v783 = vcvt.f32.s32.to.zero.pseudo %v687
          %v784 = vcvt.f32.s32.to.zero.pseudo %v688
          %785 = vset.pattern.permute.xlu0 0
          %786 = vperm.xlu0 %785, %v769
          %v787 = vpop.permute.xlu0 %786
          %788 = vset.pattern.permute.xlu0 0
          %789 = vperm.xlu0 %788, %v770
          %v790 = vpop.permute.xlu0 %789
          %791 = vset.pattern.permute.xlu0 0
          %792 = vperm.xlu0 %791, %v771
          %v793 = vpop.permute.xlu0 %792
          %794 = vset.pattern.permute.xlu0 0
          %795 = vperm.xlu0 %794, %v772
          %v796 = vpop.permute.xlu0 %795
          %797 = vset.pattern.permute.xlu0 0
          %798 = vperm.xlu0 %797, %v773
          %v799 = vpop.permute.xlu0 %798
          %800 = vset.pattern.permute.xlu0 0
          %801 = vperm.xlu0 %800, %v774
          %v802 = vpop.permute.xlu0 %801
          %803 = vset.pattern.permute.xlu0 0
          %804 = vperm.xlu0 %803, %v775
          %v805 = vpop.permute.xlu0 %804
          %806 = vset.pattern.permute.xlu0 0
          %807 = vperm.xlu0 %806, %v776
          %v808 = vpop.permute.xlu0 %807
          %809 = vset.pattern.permute.xlu0 0
          %810 = vperm.xlu0 %809, %v777
          %v811 = vpop.permute.xlu0 %810
          %812 = vset.pattern.permute.xlu0 0
          %813 = vperm.xlu0 %812, %v778
          %v814 = vpop.permute.xlu0 %813
          %815 = vset.pattern.permute.xlu0 0
          %816 = vperm.xlu0 %815, %v779
          %v817 = vpop.permute.xlu0 %816
          %818 = vset.pattern.permute.xlu0 0
          %819 = vperm.xlu0 %818, %v780
          %v820 = vpop.permute.xlu0 %819
          %821 = vset.pattern.permute.xlu0 0
          %822 = vperm.xlu0 %821, %v781
          %v823 = vpop.permute.xlu0 %822
          %824 = vset.pattern.permute.xlu0 0
          %825 = vperm.xlu0 %824, %v782
          %v826 = vpop.permute.xlu0 %825
          %827 = vset.pattern.permute.xlu0 0
          %828 = vperm.xlu0 %827, %v783
          %v829 = vpop.permute.xlu0 %828
          %830 = vset.pattern.permute.xlu0 0
          %831 = vperm.xlu0 %830, %v784
          %v832 = vpop.permute.xlu0 %831
          %vm833 = vcmp.lt.u32.totalorder %v753, %v787
          %vm834 = vcmp.lt.u32.totalorder %v754, %v790
          %vm835 = vcmp.lt.u32.totalorder %v755, %v793
          %vm836 = vcmp.lt.u32.totalorder %v756, %v796
          %vm837 = vcmp.lt.u32.totalorder %v757, %v799
          %vm838 = vcmp.lt.u32.totalorder %v758, %v802
          %vm839 = vcmp.lt.u32.totalorder %v759, %v805
          %vm840 = vcmp.lt.u32.totalorder %v760, %v808
          %vm841 = vcmp.lt.u32.totalorder %v761, %v811
          %vm842 = vcmp.lt.u32.totalorder %v762, %v814
          %vm843 = vcmp.lt.u32.totalorder %v763, %v817
          %vm844 = vcmp.lt.u32.totalorder %v764, %v820
          %vm845 = vcmp.lt.u32.totalorder %v765, %v823
          %vm846 = vcmp.lt.u32.totalorder %v766, %v826
          %vm847 = vcmp.lt.u32.totalorder %v767, %v829
          %vm848 = vcmp.lt.u32.totalorder %v768, %v832
          %v849 = vld [vmem:[%s134] sm:$0xff]
          %v850 = vsel %vm833, 1, 0
          %v851 = vsel %vm834, 1, 0
          %v852 = vsel %vm835, 1, 0
          %v853 = vsel %vm836, 1, 0
          %v854 = vsel %vm837, 1, 0
          %v855 = vsel %vm838, 1, 0
          %v856 = vsel %vm839, 1, 0
          %v857 = vsel %vm840, 1, 0
          %v858 = vsel %vm841, 1, 0
          %v859 = vsel %vm842, 1, 0
          %v860 = vsel %vm843, 1, 0
          %v861 = vsel %vm844, 1, 0
          %v862 = vsel %vm845, 1, 0
          %v863 = vsel %vm846, 1, 0
          %v864 = vsel %vm847, 1, 0
          %v865 = vsel %vm848, 1, 0
          %v866 = vcvt.s32.f32 %v850
          %v867 = vcvt.s32.f32 %v851
          %v868 = vcvt.s32.f32 %v852
          %v869 = vcvt.s32.f32 %v853
          %v870 = vcvt.s32.f32 %v854
          %v871 = vcvt.s32.f32 %v855
          %v872 = vcvt.s32.f32 %v856
          %v873 = vcvt.s32.f32 %v857
          %v874 = vcvt.s32.f32 %v858
          %v875 = vcvt.s32.f32 %v859
          %v876 = vcvt.s32.f32 %v860
          %v877 = vcvt.s32.f32 %v861
          %v878 = vcvt.s32.f32 %v862
          %v879 = vcvt.s32.f32 %v863
          %v880 = vcvt.s32.f32 %v864
          %v881 = vcvt.s32.f32 %v865
          %v882 = vpack.c.bf16 %v867, %v866
          %v883 = vpack.c.bf16 %v869, %v868
          %v884 = vpack.c.bf16 %v871, %v870
          %v885 = vpack.c.bf16 %v873, %v872
          %v886 = vpack.c.bf16 %v875, %v874
          %v887 = vpack.c.bf16 %v877, %v876
          %v888 = vpack.c.bf16 %v879, %v878
          %v889 = vpack.c.bf16 %v881, %v880
          %890 = vmatprep.subr.bf16.mxu0 0
          %891 = vmatpush1.bf16.msra.mxu0 %v889
          %892 = vmatprep.subr.bf16.mxu0 0
          %893 = vmatpush1.bf16.msra.mxu0 %v888
          %894 = vmatprep.subr.bf16.mxu0 0
          %895 = vmatpush1.bf16.msra.mxu0 %v887
          %896 = vmatprep.subr.bf16.mxu0 0
          %897 = vmatpush1.bf16.msra.mxu0 %v886
          %898 = vmatprep.subr.bf16.mxu0 0
          %899 = vmatpush1.bf16.msra.mxu0 %v885
          %900 = vmatprep.subr.bf16.mxu0 0
          %901 = vmatpush1.bf16.msra.mxu0 %v884
          %902 = vmatprep.subr.bf16.mxu0 0
          %903 = vmatpush1.bf16.msra.mxu0 %v883
          %904 = vmatprep.subr.bf16.mxu0 0
          %905 = vmatpush1.bf16.msra.mxu0 %v882
          %906 = vmatprep.subr.bf16.mxu0 0
          %907 = vmatpush2.bf16.msra.mxu0 0
          %908 = vmatprep.subr.bf16.mxu0 0
          %909 = vmatpush2.bf16.msra.mxu0 0
          %910 = vmatprep.subr.bf16.mxu0 0
          %911 = vmatpush2.bf16.msra.mxu0 0
          %912 = vmatprep.subr.bf16.mxu0 0
          %913 = vmatpush2.bf16.msra.mxu0 0
          %914 = vmatprep.subr.bf16.mxu0 0
          %915 = vmatpush2.bf16.msra.mxu0 0
          %916 = vmatprep.subr.bf16.mxu0 0
          %917 = vmatpush2.bf16.msra.mxu0 0
          %918 = vmatprep.subr.bf16.mxu0 0
          %919 = vmatpush2.bf16.msra.mxu0 0
          %920 = vmatprep.subr.bf16.mxu0 0
          %921 = vmatpush2.bf16.msra.mxu0 0
          %922 = vmatprep.mubr.bf16.mxu0 0
          %923 = vmatmul.mubr.bf16.gmra.mxu0 1065369472
          %v924 = vpop.f32.mrf.mxu0
          %v925 = vadd.f32 0.0, %v924
          %v926 = vpop.f32.mrf.mxu0
          %v927 = vpop.f32.mrf.mxu0
          %v928 = vpop.f32.mrf.mxu0
          %929 = vdwg.mxu0
          %v930 = vadd.f32 %v849, %v925
          %931 = vst [vmem:[%s134] sm:$0xff] %v930
        $region36: #{tpu_custom_call.1} parent=27 // pred_fallthru
          _
        %s932 = sand.u32 %s67, 1
        %s933 = scalar_lea.sflag [#allocation5], %s932
        %s934 = sand.u32 %s67, 1
        %s935 = smul.addr %s934, 8
        %s936 = scalar_lea.vmem [#allocation6], %s935
        // Predicated region
        $region37: #{tpu_custom_call.1} parent=27 // pred_check
          %p937 = pneg %p77
        $region38: #{tpu_custom_call.1} parent=27 // pred_check_branch
          %939 = sbr.rel (%p937) target = $region40
        $region39: #{tpu_custom_call.1} parent=27 // pred_region
          %s941 = ssub.s32 128, 128
          %942 = vsyncadd %s933, %s941
          %s943 = smul.addr %s17, 128
          %s944 = scalar_lea.hbm %s2, %s943
          %s946 = sshll.u32 %s936, 4
          %s947 = int_to_ptr.vmem [resolvable:$true] %s946
          %949 = dma.vmem_to_hbm [thread:$0]  %s947, 128, %s944, %s933
        $region40: #{tpu_custom_call.1} parent=27 // pred_fallthru
          _
      $region28: #{tpu_custom_call.1} parent=5 // pred_fallthru
        _
      %p950 = scmp.le.s32.totalorder 2, %s12
      // Predicated region
      $region41: #{tpu_custom_call.1} parent=5 // pred_check
        %p951 = pneg %p950
      $region42: #{tpu_custom_call.1} parent=5 // pred_check_branch
        %953 = sbr.rel (%p951) target = $region44
      $region43: #{tpu_custom_call.1} parent=5 // pred_region
        %s954 = ssub.s32 %s12, 2
        // Predicated region
        $region45: #{tpu_custom_call.1} parent=43 // pred_check
          %p955 = pneg %p83
        $region46: #{tpu_custom_call.1} parent=43 // pred_check_branch
          %957 = sbr.rel (%p955) target = $region48
        $region47: #{tpu_custom_call.1} parent=43 // pred_region
          %s958 = sand.u32 %s68, 1
          %s959 = scalar_lea.sflag [#allocation5], %s958
          %s960 = sand.u32 %s68, 1
          %s961 = smul.addr %s960, 8
          %s962 = scalar_lea.vmem [#allocation6], %s961
          %963 = dma.done %s959, 128
        $region48: #{tpu_custom_call.1} parent=43 // pred_fallthru
          _
      $region44: #{tpu_custom_call.1} parent=5 // pred_fallthru
        _
    $region6: #{tpu_custom_call.1} parent=1 // loop_footer
      %s16 = sadd.s32 1, %s12
    $region7: #{tpu_custom_call.1} parent=1 // loop_footer_branch
      %11 = sbr.rel target = $region3
    $region8: #{tpu_custom_call.1} parent=1 // loop_exit
      _
    %964 = vsyncpa [#allocation4], 1
    %s965 = scalar_lea.sflag [#allocation4], 1
    %966 = vsyncpa %s965, 1
    %967 = vsyncpa [#allocation5], 1
    %s968 = scalar_lea.sflag [#allocation5], 1
    %969 = vsyncpa %s968, 1

</llo_original>
